<compile_context>
chip_gen: v5e
topology: v5e:2x2
jax: 0.10.0
libtpu: 0.0.40
codegen_flags: <defaults>
</compile_context>

<pallas_src>
import functools

import jax
import jax.numpy as jnp
from jax.experimental import pallas as pl
from jax.experimental.pallas import tpu as pltpu

_LANES = 128


def _round_up(x, m):
    return (x + m - 1) // m * m


# ---------------------------------------------------------------------------
# Binary (C == 2) lane-packed streaming kernel
# ---------------------------------------------------------------------------
def _focal_loss_binary_kernel(d_ref, t_ref, fl_ref, w_ref, *, a0, a1, gamma):
    step = pl.program_id(1)

    @pl.when(step == 0)
    def _():
        fl_ref[...] = jnp.zeros_like(fl_ref)
        w_ref[...] = jnp.zeros_like(w_ref)

    d = d_ref[...].astype(jnp.float32)            # [TR, 128] margin x1 - x0
    t = t_ref[...].astype(jnp.int32)              # [TR, 128] int8->i32, -1 = pad

    pos = t == 1
    s = jnp.where(pos, d, -d)                     # margin of the target class
    e = jnp.exp(-jnp.abs(s))
    # log p_target = log sigmoid(s) = -softplus(-s), numerically stable.
    log_pt = -(jnp.maximum(-s, 0.0) + jnp.log1p(e))
    # p_target = sigmoid(s) derived from e (no second exp).
    r = 1.0 / (1.0 + e)
    pt = jnp.where(s >= 0, r, e * r)

    w = jnp.where(pos, a1, a0)
    w = jnp.where(t >= 0, w, 0.0)                 # exclude padding rows
    ce = -w * log_pt
    q = 1.0 - pt
    focal = q * q if gamma == 2.0 else jnp.power(jnp.maximum(q, 0.0), gamma)
    fl = focal * ce                               # 0 for padding (w == 0)

    # Per-step sublane reduce -> tiny lane-dense accumulators that live in the
    # (8, 128) output block resident across the "arbitrary" axis.
    fl_ref[0:1, :] += jnp.sum(fl, axis=0, keepdims=True)
    w_ref[0:1, :] += jnp.sum(w, axis=0, keepdims=True)


def focal_loss_binary(logits, target, alpha=(0.25, 0.75), gamma=2.0,
                      tile_rows=2048, num_partials=2):
    """Binary focal loss ('mean' reduction) as a streaming Pallas reduction."""
    n, c = logits.shape
    assert c == 2, "binary path requires C == 2"
    a0, a1 = float(alpha[0]), float(alpha[1])
    p_parts = int(num_partials)

    rows_needed = pl.cdiv(n, _LANES)
    # Pick (steps, tile height) so the last tile is mostly full (<=31 wasted
    # rows per core) and the tile height is a multiple of 32 (int8 packing).
    steps = pl.cdiv(rows_needed, p_parts * int(tile_rows))
    tr = _round_up(pl.cdiv(rows_needed, p_parts * steps), 32)
    rows_total = p_parts * steps * tr
    n_pad = rows_total * _LANES
    pad = n_pad - n

    # Single fused prep pass over the logits: per-example margin d = x1 - x0.
    d = logits[:, 1].astype(jnp.float32) - logits[:, 0].astype(jnp.float32)
    if logits.dtype == jnp.bfloat16:
        d = d.astype(jnp.bfloat16)        # keep bf16 end-to-end; kernel upcasts
    d = jnp.pad(d, (0, pad)).reshape(rows_total, _LANES)
    t = jnp.pad(target.astype(jnp.int8), (0, pad),
                constant_values=-1).reshape(rows_total, _LANES)

    def row_map(p, i):
        return (p * steps + i, 0)

    def part_map(p, i):
        return (p, 0)

    cost = pl.CostEstimate(
        flops=16 * n_pad,
        transcendentals=2 * n_pad,
        bytes_accessed=int(n_pad * (jnp.dtype(d.dtype).itemsize + 1)
                           + 2 * p_parts * 8 * _LANES * 4),
    )

    fl_part, w_part = pl.pallas_call(
        functools.partial(_focal_loss_binary_kernel,
                          a0=a0, a1=a1, gamma=float(gamma)),
        out_shape=(
            jax.ShapeDtypeStruct((p_parts * 8, _LANES), jnp.float32),
            jax.ShapeDtypeStruct((p_parts * 8, _LANES), jnp.float32),
        ),
        grid_spec=pltpu.PrefetchScalarGridSpec(
            num_scalar_prefetch=0,
            grid=(p_parts, steps),
            in_specs=[
                pl.BlockSpec((tr, _LANES), row_map),
                pl.BlockSpec((tr, _LANES), row_map),
            ],
            out_specs=[
                pl.BlockSpec((8, _LANES), part_map),
                pl.BlockSpec((8, _LANES), part_map),
            ],
        ),
        compiler_params=pltpu.CompilerParams(
            dimension_semantics=("parallel", "arbitrary")),
        cost_estimate=cost,
    )(d, t)
    return jnp.sum(fl_part) / jnp.sum(w_part)


# ---------------------------------------------------------------------------
# General (any C) lane-packed kernel: classes on sublanes, examples on lanes
# ---------------------------------------------------------------------------
def _focal_loss_general_kernel(x_ref, t_ref, a_ref, fl_ref, w_ref, *, gamma):
    step = pl.program_id(0)

    @pl.when(step == 0)
    def _():
        fl_ref[...] = jnp.zeros_like(fl_ref)
        w_ref[...] = jnp.zeros_like(w_ref)

    x = x_ref[...].astype(jnp.float32)            # [C, TN]
    t = t_ref[...].astype(jnp.int32)              # [1, TN], -1 = padding
    a = a_ref[...].astype(jnp.float32)            # [C, 1]
    c, tn = x.shape

    m = jnp.max(x, axis=0, keepdims=True)         # sublane reduce
    z = x - m
    log_s = jnp.log(jnp.sum(jnp.exp(z), axis=0, keepdims=True))

    row = jax.lax.broadcasted_iota(jnp.int32, (c, tn), 0)
    onehot = (row == t).astype(jnp.float32)       # all-zero column for padding

    log_pt = jnp.sum(z * onehot, axis=0, keepdims=True) - log_s
    pt = jnp.exp(log_pt)
    w = jnp.sum(a * onehot, axis=0, keepdims=True)   # 0 for padding columns

    ce = -w * log_pt
    q = 1.0 - pt
    focal = q * q if gamma == 2.0 else jnp.power(jnp.maximum(q, 0.0), gamma)

    fl_ref[...] += focal * ce                     # lane-dense partial sums
    w_ref[...] += w


def focal_loss_general(logits, target, alpha, gamma=2.0, tile_n=None):
    n, c = logits.shape
    # Lane-pack: classes on the sublane axis, examples on the lane axis.
    if tile_n is None:
        budget = 8 * 1024 * 1024                  # per double-buffered input
        tn = (budget // (2 * 4 * c)) // _LANES * _LANES
        tn = max(_LANES, min(tn, 4096))
    else:
        tn = _round_up(int(tile_n), _LANES)
    tn = max(_LANES, min(tn, _round_up(n, _LANES)))
    steps = pl.cdiv(n, tn)
    n_pad = steps * tn
    pad = n_pad - n

    x_t = jnp.pad(logits.T, ((0, 0), (0, pad)))   # [C, n_pad], native dtype
    t = jnp.pad(target.astype(jnp.int32), (0, pad),
                constant_values=-1).reshape(1, n_pad)
    a2 = jnp.asarray(alpha, jnp.float32).reshape(c, 1)

    fl_part, w_part = pl.pallas_call(
        functools.partial(_focal_loss_general_kernel, gamma=float(gamma)),
        out_shape=(
            jax.ShapeDtypeStruct((1, tn), jnp.float32),
            jax.ShapeDtypeStruct((1, tn), jnp.float32),
        ),
        grid_spec=pltpu.PrefetchScalarGridSpec(
            num_scalar_prefetch=0,
            grid=(steps,),
            in_specs=[
                pl.BlockSpec((c, tn), lambda i: (0, i)),
                pl.BlockSpec((1, tn), lambda i: (0, i)),
                pl.BlockSpec((c, 1), lambda i: (0, 0)),
            ],
            out_specs=[
                pl.BlockSpec((1, tn), lambda i: (0, 0)),
                pl.BlockSpec((1, tn), lambda i: (0, 0)),
            ],
        ),
        compiler_params=pltpu.CompilerParams(
            dimension_semantics=("arbitrary",)),
    )(x_t, t, a2)
    return jnp.sum(fl_part) / jnp.sum(w_part)


def focal_loss(logits, target, alpha, gamma=2.0):
    """Focal loss ('mean' reduction) matching the PyTorch FocalLoss module."""
    c = logits.shape[1]
    alpha = jnp.asarray(alpha, jnp.float32)
    if c == 2:
        return focal_loss_binary(logits, target,
                                 (float(alpha[0]), float(alpha[1])), gamma)
    return focal_loss_general(logits, target, alpha, gamma)


def focal_loss_ref(logits, target, alpha, gamma=2.0):
    """Pure-JAX reference for correctness checking."""
    logits = logits.astype(jnp.float32)
    alpha = jnp.asarray(alpha, jnp.float32)
    log_sm = jax.nn.log_softmax(logits, axis=1)
    sm = jax.nn.softmax(logits, axis=1)
    idx = jnp.arange(logits.shape[0])
    pt = sm[idx, target]
    w = alpha[target]
    ce = -w * log_sm[idx, target]
    fl = (1.0 - pt) ** gamma * ce
    return jnp.sum(fl) / jnp.sum(w)


if __name__ == "__main__":
    key = jax.random.PRNGKey(0)
    k1, k2, k3, k4 = jax.random.split(key, 4)

    # Module defaults: gamma=2, alpha=0.25 (float) -> class weights [0.25, 0.75].
    gamma = 2.0
    alpha2 = jnp.array([0.25, 0.75], dtype=jnp.float32)

    # Small module-like shape: batch of 8 examples, 2 classes.
    N, C = 8, 2
    logits = jax.random.normal(k1, (N, C), dtype=jnp.float32)
    target = jax.random.randint(k2, (N,), 0, C, dtype=jnp.int32)
    loss = jax.block_until_ready(focal_loss(logits, target, alpha2, gamma=gamma))
    ref = focal_loss_ref(logits, target, alpha2, gamma=gamma)
    assert jnp.allclose(loss, ref, rtol=1e-5, atol=1e-6), (loss, ref)

    # Larger binary case: exercises both megacore partials and multiple row
    # tiles per partial (grid (2, 2) at tile_rows=32).
    N2 = 10000
    logits2 = jax.random.normal(k3, (N2, 2), dtype=jnp.float32)
    target2 = jax.random.randint(k4, (N2,), 0, 2, dtype=jnp.int32)
    loss2 = jax.block_until_ready(
        focal_loss_binary(logits2, target2, (0.25, 0.75), gamma, tile_rows=32))
    ref2 = focal_loss_ref(logits2, target2, alpha2, gamma=gamma)
    assert jnp.allclose(loss2, ref2, rtol=1e-4, atol=1e-5), (loss2, ref2)

    # General (list alpha, C > 2) lane-packed path, several lane tiles.
    C3 = 4
    alpha3 = jnp.array([0.1, 0.2, 0.3, 0.4], dtype=jnp.float32)
    logits3 = jax.random.normal(k1, (1000, C3), dtype=jnp.float32)
    target3 = jax.random.randint(k2, (1000,), 0, C3, dtype=jnp.int32)
    loss3 = jax.block_until_ready(
        focal_loss_general(logits3, target3, alpha3, gamma=gamma, tile_n=256))
    ref3 = focal_loss_ref(logits3, target3, alpha3, gamma=gamma)
    assert jnp.allclose(loss3, ref3, rtol=1e-4, atol=1e-5), (loss3, ref3)

    print("KERNEL_OK")
</pallas_src>

<mosaic_0001>
module attributes {stable_mosaic.version = 11 : i64} {
  func.func @_focal_loss_binary_kernel(%arg0: i32, %arg1: i32, %arg2: memref<32x128xf32, #tpu.memory_space<vmem>>, %arg3: memref<32x128xi8, #tpu.memory_space<vmem>>, %arg4: memref<8x128xf32, #tpu.memory_space<vmem>>, %arg5: memref<8x128xf32, #tpu.memory_space<vmem>>) attributes {dimension_semantics = [#tpu.dimension_semantics<parallel>, #tpu.dimension_semantics<arbitrary>], iteration_bounds = array<i64: 2, 1>, scalar_prefetch = 0 : i64, scratch_operands = 0 : i64, tpu.core_type = #tpu.core_type<tc>, window_params = [{transform_indices = @transform_0, window_bounds = array<i64: 32, 128>}, {transform_indices = @transform_1, window_bounds = array<i64: 32, 128>}, {transform_indices = @transform_2, window_bounds = array<i64: 8, 128>}, {transform_indices = @transform_3, window_bounds = array<i64: 8, 128>}]} {
    %c0_i32 = arith.constant 0 : i32
    %0 = arith.cmpi eq, %arg1, %c0_i32 : i32
    %1 = arith.extui %0 : i1 to i32
    %c0_i32_0 = arith.constant 0 : i32
    %2 = arith.cmpi ne, %1, %c0_i32_0 : i32
    scf.if %2 {
      %cst_27 = arith.constant 0.000000e+00 : f32
      %55 = vector.broadcast %cst_27 : f32 to vector<8x128xf32>
      %c0_28 = arith.constant 0 : index
      %c0_29 = arith.constant 0 : index
      %56 = vector.load %arg4[%c0_28, %c0_29] : memref<8x128xf32, #tpu.memory_space<vmem>>, vector<8x128xf32>
      tpu.vector_store %arg4[%c0_28, %c0_29], %55 {strides = array<i32>} : memref<8x128xf32, #tpu.memory_space<vmem>>, vector<8x128xf32>,
      %cst_30 = arith.constant 0.000000e+00 : f32
      %57 = vector.broadcast %cst_30 : f32 to vector<8x128xf32>
      %c0_31 = arith.constant 0 : index
      %c0_32 = arith.constant 0 : index
      %58 = vector.load %arg5[%c0_31, %c0_32] : memref<8x128xf32, #tpu.memory_space<vmem>>, vector<8x128xf32>
      tpu.vector_store %arg5[%c0_31, %c0_32], %57 {strides = array<i32>} : memref<8x128xf32, #tpu.memory_space<vmem>>, vector<8x128xf32>,
    } else {
    }
    %c0 = arith.constant 0 : index
    %c0_1 = arith.constant 0 : index
    %3 = vector.load %arg2[%c0, %c0_1] : memref<32x128xf32, #tpu.memory_space<vmem>>, vector<32x128xf32>
    %c0_2 = arith.constant 0 : index
    %c0_3 = arith.constant 0 : index
    %4 = vector.load %arg3[%c0_2, %c0_3] : memref<32x128xi8, #tpu.memory_space<vmem>>, vector<32x128xi8>
    %5 = arith.extsi %4 : vector<32x128xi8> to vector<32x128xi32>
    %c1_i32 = arith.constant 1 : i32
    %6 = vector.broadcast %c1_i32 : i32 to vector<32x128xi32>
    %7 = arith.cmpi eq, %5, %6 : vector<32x128xi32>
    %cst = arith.constant 0.000000e+00 : f32
    %8 = vector.broadcast %cst : f32 to vector<32x128xf32>
    %9 = arith.subf %8, %3 : vector<32x128xf32>
    %10 = arith.select %7, %3, %9 : vector<32x128xi1>, vector<32x128xf32>
    %11 = math.absf %10 : vector<32x128xf32>
    %cst_4 = arith.constant 0.000000e+00 : f32
    %12 = vector.broadcast %cst_4 : f32 to vector<32x128xf32>
    %13 = arith.subf %12, %11 : vector<32x128xf32>
    %14 = math.exp %13 : vector<32x128xf32>
    %cst_5 = arith.constant 0.000000e+00 : f32
    %15 = vector.broadcast %cst_5 : f32 to vector<32x128xf32>
    %16 = arith.subf %15, %10 : vector<32x128xf32>
    %cst_6 = arith.constant 0.000000e+00 : f32
    %17 = vector.broadcast %cst_6 : f32 to vector<32x128xf32>
    %18 = arith.maximumf %16, %17 : vector<32x128xf32>
    %19 = math.log1p %14 : vector<32x128xf32>
    %20 = arith.addf %18, %19 : vector<32x128xf32>
    %cst_7 = arith.constant 0.000000e+00 : f32
    %21 = vector.broadcast %cst_7 : f32 to vector<32x128xf32>
    %22 = arith.subf %21, %20 : vector<32x128xf32>
    %cst_8 = arith.constant 1.000000e+00 : f32
    %23 = vector.broadcast %cst_8 : f32 to vector<32x128xf32>
    %24 = arith.addf %23, %14 : vector<32x128xf32>
    %cst_9 = arith.constant 1.000000e+00 : f32
    %25 = vector.broadcast %cst_9 : f32 to vector<32x128xf32>
    %26 = arith.divf %25, %24 : vector<32x128xf32>
    %cst_10 = arith.constant 0.000000e+00 : f32
    %27 = vector.broadcast %cst_10 : f32 to vector<32x128xf32>
    %28 = arith.cmpf oge, %10, %27 : vector<32x128xf32>
    %29 = arith.mulf %14, %26 : vector<32x128xf32>
    %30 = arith.select %28, %26, %29 : vector<32x128xi1>, vector<32x128xf32>
    %cst_11 = arith.constant 7.500000e-01 : f32
    %cst_12 = arith.constant 2.500000e-01 : f32
    %31 = vector.broadcast %cst_11 : f32 to vector<32x128xf32>
    %32 = vector.broadcast %cst_12 : f32 to vector<32x128xf32>
    %33 = arith.select %7, %31, %32 : vector<32x128xi1>, vector<32x128xf32>
    %c0_i32_13 = arith.constant 0 : i32
    %34 = vector.broadcast %c0_i32_13 : i32 to vector<32x128xi32>
    %35 = arith.cmpi sge, %5, %34 : vector<32x128xi32>
    %cst_14 = arith.constant 0.000000e+00 : f32
    %36 = vector.broadcast %cst_14 : f32 to vector<32x128xf32>
    %37 = arith.select %35, %33, %36 : vector<32x128xi1>, vector<32x128xf32>
    %cst_15 = arith.constant 0.000000e+00 : f32
    %38 = vector.broadcast %cst_15 : f32 to vector<32x128xf32>
    %39 = arith.subf %38, %37 : vector<32x128xf32>
    %40 = arith.mulf %39, %22 : vector<32x128xf32>
    %cst_16 = arith.constant 1.000000e+00 : f32
    %41 = vector.broadcast %cst_16 : f32 to vector<32x128xf32>
    %42 = arith.subf %41, %30 : vector<32x128xf32>
    %43 = arith.mulf %42, %42 : vector<32x128xf32>
    %44 = arith.mulf %43, %40 : vector<32x128xf32>
    %c0_17 = arith.constant 0 : index
    %c0_18 = arith.constant 0 : index
    %45 = vector.load %arg4[%c0_17, %c0_18] : memref<8x128xf32, #tpu.memory_space<vmem>>, vector<1x128xf32>
    %cst_19 = arith.constant dense<0.000000e+00> : vector<128xf32>
    %46 = vector.multi_reduction <add>, %44, %cst_19 [0] : vector<32x128xf32> to vector<128xf32>
    %47 = vector.shape_cast %46 : vector<128xf32> to vector<1x128xf32>
    %48 = arith.addf %45, %47 : vector<1x128xf32>
    %c0_20 = arith.constant 0 : index
    %c0_21 = arith.constant 0 : index
    %49 = vector.load %arg4[%c0_20, %c0_21] : memref<8x128xf32, #tpu.memory_space<vmem>>, vector<1x128xf32>
    tpu.vector_store %arg4[%c0_20, %c0_21], %48 {strides = array<i32>} : memref<8x128xf32, #tpu.memory_space<vmem>>, vector<1x128xf32>,
    %c0_22 = arith.constant 0 : index
    %c0_23 = arith.constant 0 : index
    %50 = vector.load %arg5[%c0_22, %c0_23] : memref<8x128xf32, #tpu.memory_space<vmem>>, vector<1x128xf32>
    %cst_24 = arith.constant dense<0.000000e+00> : vector<128xf32>
    %51 = vector.multi_reduction <add>, %37, %cst_24 [0] : vector<32x128xf32> to vector<128xf32>
    %52 = vector.shape_cast %51 : vector<128xf32> to vector<1x128xf32>
    %53 = arith.addf %50, %52 : vector<1x128xf32>
    %c0_25 = arith.constant 0 : index
    %c0_26 = arith.constant 0 : index
    %54 = vector.load %arg5[%c0_25, %c0_26] : memref<8x128xf32, #tpu.memory_space<vmem>>, vector<1x128xf32>
    tpu.vector_store %arg5[%c0_25, %c0_26], %53 {strides = array<i32>} : memref<8x128xf32, #tpu.memory_space<vmem>>, vector<1x128xf32>,
    return
  }
  func.func @transform_0(%arg0: i32, %arg1: i32) -> (i32, i32) {
    %c1_i32 = arith.constant 1 : i32
    %0 = arith.muli %arg0, %c1_i32 : i32
    %1 = arith.addi %0, %arg1 : i32
    %c0_i32 = arith.constant 0 : i32
    %c0_i32_0 = arith.constant 0 : i32
    return %1, %c0_i32 : i32, i32
  }
  func.func @transform_1(%arg0: i32, %arg1: i32) -> (i32, i32) {
    %c1_i32 = arith.constant 1 : i32
    %0 = arith.muli %arg0, %c1_i32 : i32
    %1 = arith.addi %0, %arg1 : i32
    %c0_i32 = arith.constant 0 : i32
    %c0_i32_0 = arith.constant 0 : i32
    return %1, %c0_i32 : i32, i32
  }
  func.func @transform_2(%arg0: i32, %arg1: i32) -> (i32, i32) {
    %c0_i32 = arith.constant 0 : i32
    %c0_i32_0 = arith.constant 0 : i32
    return %arg0, %c0_i32 : i32, i32
  }
  func.func @transform_3(%arg0: i32, %arg1: i32) -> (i32, i32) {
    %c0_i32 = arith.constant 0 : i32
    %c0_i32_0 = arith.constant 0 : i32
    return %arg0, %c0_i32 : i32, i32
  }
}

</mosaic_0001>

<llo_original>
// kernel: tpu_custom_call.1
$region0: #{tpu_custom_call.1}
  #allocation0 [shape = 'u32[]', space=smem, size = 0x4, offset = 0x4, fixed_abs, tag = 'smem constant byte address 0x4 - core index']
  #allocation1 [shape = 'u32[72,128]{1,0:T(1,128)}', space=vmem, size = 0x9000, scoped, tag = 'internal scratch']
  %s0 = inlined_call_operand.hbm [shape: f32[64,128], index: 0, kind: input, shape index: {}]
  %s1 = inlined_call_operand.hbm [shape: s8[64,128], index: 1, kind: input, shape index: {}]
  %s2 = inlined_call_operand.hbm [shape: f32[16,128], index: 2, kind: output, shape index: {0}]
  %s3 = inlined_call_operand.hbm [shape: f32[16,128], index: 3, kind: output, shape index: {1}]
  %4 = xla_tuple %s2, %s3
  %s5 = sld [smem:[#allocation0]]
  $region61: #{tpu_custom_call.1} parent=0
    _
  %s7 = ssub.s32 1, %s5
  %s8 = scalar_select 0, %s7, %s5
  $region1: #{tpu_custom_call.1} parent=0
    #allocation2 [shape = 'u8[32768]{0}', space=vmem, size = 0x8000, scoped, tag = 'input window, operand 0']
    #allocation3 [shape = 's32[2]{0}', space=sflag, size = 0x8, scoped, tag = 'scoped memory for tpu_custom_call.1']
    #allocation4 [shape = 's32[2]{0}', space=sflag, size = 0x8, scoped, tag = 'scoped memory for tpu_custom_call.1']
    #allocation5 [shape = 'u8[8192]{0}', space=vmem, size = 0x2000, scoped, tag = 'input window, operand 1']
    #allocation6 [shape = 's32[2]{0}', space=sflag, size = 0x8, scoped, tag = 'scoped memory for tpu_custom_call.1']
    #allocation7 [shape = 'u8[8192]{0}', space=vmem, size = 0x2000, scoped, tag = 'output window, operand 0']
    #allocation8 [shape = 'u8[8192]{0}', space=vmem, size = 0x2000, scoped, tag = 'output window, operand 1']
    #allocation9 [shape = 's32[2]{0}', space=sflag, size = 0x8, scoped, tag = 'scoped memory for tpu_custom_call.1']
    %9 = vsyncpa [#allocation3], 0
    %s10 = scalar_lea.sflag [#allocation3], 1
    %11 = vsyncpa %s10, 0
    %12 = vsyncpa [#allocation6], 0
    %s13 = scalar_lea.sflag [#allocation6], 1
    %14 = vsyncpa %s13, 0
    %15 = vsyncpa [#allocation4], 0
    %s16 = scalar_lea.sflag [#allocation4], 1
    %17 = vsyncpa %s16, 0
    %18 = vsyncpa [#allocation9], 0
    %s19 = scalar_lea.sflag [#allocation9], 1
    %20 = vsyncpa %s19, 0
    loop: start=0, step=1, limit=4
    $region2: #{tpu_custom_call.1} parent=1 // loop_pre_header
      _
    $region3: #{tpu_custom_call.1} parent=1 // loop_header
      %s22 = sphi 0, %s26
      %p23 = scmp.ge.s32.totalorder %s22, 4
      %s29 = sphi 0, %s41
      %s30 = sphi 0, %s37
      %s31 = sphi 0, %s29
      %s32 = sphi 0, %s30
      %s33 = sphi 0, %s31
      %s34 = sphi 0, %s32
      %s46 = sphi 0, %s48
      %s49 = sphi 0, %s46
      %s50 = sphi 0, %s49
      %s66 = sphi 0, %s50
      %s74 = sphi 0, %s76
      %s77 = sphi 0, %s74
      %s78 = sphi 0, %s77
      %s94 = sphi 0, %s78
      %s100 = sphi 0, %s102
      %s103 = sphi 0, %s100
      %s104 = sphi 0, %s103
      %s120 = sphi 0, %s104
      %s126 = sphi 0, %s128
      %s129 = sphi 0, %s126
      %s130 = sphi 0, %s129
      %s146 = sphi 0, %s130
    $region4: #{tpu_custom_call.1} parent=1 // loop_header_branch
      %25 = sbr.rel (%p23) target = $region8
    $region5: #{tpu_custom_call.1} parent=1 // loop_body
      %s27 = ssub.s32 %s22, 1
      %s28 = ssub.s32 %s22, 2
      %s35 = sadd.s32 1, %s30
      %p36 = scmp.ge.s32.totalorder %s35, 1
      %s37 = scalar_select %p36, 0, %s35
      %s38 = sadd.s32 1, %s29
      %s39 = scalar_select %p36, %s38, %s29
      %p40 = scmp.ge.s32.totalorder %s39, 2
      %s41 = scalar_select %p40, 0, %s39
      %s42 = sadd.s32 %s29, %s30
      %s43 = sadd.s32 %s41, %s37
      %s44 = ssub.s32 %s42, %s43
      %p45 = scmp.eq.s32.totalorder %s44, 0
      %s47 = sadd.s32 %s46, 1
      %s48 = scalar_select %p45, %s46, %s47
      %p51 = pneg %p45
      %p52 = scmp.eq.s32.totalorder %s22, 1
      %p53 = por %p51, %p52
      %p54 = scmp.ne.s32.totalorder %s46, %s49
      %p55 = scmp.eq.s32.totalorder %s22, 0
      %p56 = por %p54, %p55
      %p57 = scmp.ne.s32.totalorder %s46, %s49
      %p58 = scmp.eq.s32.totalorder %s27, 1
      %p59 = por %p57, %p58
      %p60 = scmp.ne.s32.totalorder %s49, %s50
      %p61 = scmp.eq.s32.totalorder %s27, 0
      %p62 = por %p60, %p61
      %p63 = scmp.ne.s32.totalorder %s49, %s50
      %p64 = scmp.eq.s32.totalorder %s28, 1
      %p65 = por %p63, %p64
      %p67 = scmp.ne.s32.totalorder %s50, %s66
      %p68 = scmp.eq.s32.totalorder %s28, 0
      %p69 = por %p67, %p68
      %s70 = sadd.s32 %s29, %s30
      %s71 = sadd.s32 %s41, %s37
      %s72 = ssub.s32 %s70, %s71
      %p73 = scmp.eq.s32.totalorder %s72, 0
      %s75 = sadd.s32 %s74, 1
      %s76 = scalar_select %p73, %s74, %s75
      %p79 = pneg %p73
      %p80 = scmp.eq.s32.totalorder %s22, 1
      %p81 = por %p79, %p80
      %p82 = scmp.ne.s32.totalorder %s74, %s77
      %p83 = scmp.eq.s32.totalorder %s22, 0
      %p84 = por %p82, %p83
      %p85 = scmp.ne.s32.totalorder %s74, %s77
      %p86 = scmp.eq.s32.totalorder %s27, 1
      %p87 = por %p85, %p86
      %p88 = scmp.ne.s32.totalorder %s77, %s78
      %p89 = scmp.eq.s32.totalorder %s27, 0
      %p90 = por %p88, %p89
      %p91 = scmp.ne.s32.totalorder %s77, %s78
      %p92 = scmp.eq.s32.totalorder %s28, 1
      %p93 = por %p91, %p92
      %p95 = scmp.ne.s32.totalorder %s78, %s94
      %p96 = scmp.eq.s32.totalorder %s28, 0
      %p97 = por %p95, %p96
      %s98 = ssub.s32 %s29, %s41
      %p99 = scmp.eq.s32.totalorder %s98, 0
      %s101 = sadd.s32 %s100, 1
      %s102 = scalar_select %p99, %s100, %s101
      %p105 = pneg %p99
      %p106 = scmp.eq.s32.totalorder %s22, 1
      %p107 = por %p105, %p106
      %p108 = scmp.ne.s32.totalorder %s100, %s103
      %p109 = scmp.eq.s32.totalorder %s22, 0
      %p110 = por %p108, %p109
      %p111 = scmp.ne.s32.totalorder %s100, %s103
      %p112 = scmp.eq.s32.totalorder %s27, 1
      %p113 = por %p111, %p112
      %p114 = scmp.ne.s32.totalorder %s103, %s104
      %p115 = scmp.eq.s32.totalorder %s27, 0
      %p116 = por %p114, %p115
      %p117 = scmp.ne.s32.totalorder %s103, %s104
      %p118 = scmp.eq.s32.totalorder %s28, 1
      %p119 = por %p117, %p118
      %p121 = scmp.ne.s32.totalorder %s104, %s120
      %p122 = scmp.eq.s32.totalorder %s28, 0
      %p123 = por %p121, %p122
      %s124 = ssub.s32 %s29, %s41
      %p125 = scmp.eq.s32.totalorder %s124, 0
      %s127 = sadd.s32 %s126, 1
      %s128 = scalar_select %p125, %s126, %s127
      %p131 = pneg %p125
      %p132 = scmp.eq.s32.totalorder %s22, 1
      %p133 = por %p131, %p132
      %p134 = scmp.ne.s32.totalorder %s126, %s129
      %p135 = scmp.eq.s32.totalorder %s22, 0
      %p136 = por %p134, %p135
      %p137 = scmp.ne.s32.totalorder %s126, %s129
      %p138 = scmp.eq.s32.totalorder %s27, 1
      %p139 = por %p137, %p138
      %p140 = scmp.ne.s32.totalorder %s129, %s130
      %p141 = scmp.eq.s32.totalorder %s27, 0
      %p142 = por %p140, %p141
      %p143 = scmp.ne.s32.totalorder %s129, %s130
      %p144 = scmp.eq.s32.totalorder %s28, 1
      %p145 = por %p143, %p144
      %p147 = scmp.ne.s32.totalorder %s130, %s146
      %p148 = scmp.eq.s32.totalorder %s28, 0
      %p149 = por %p147, %p148
      %p150 = scmp.le.s32.totalorder 1, %s22
      %p151 = scmp.lt.s32.totalorder %s22, 3
      %p152 = pnand %p150, %p151
      %p153 = pneg %p152
      // Predicated region
      $region9: #{tpu_custom_call.1} parent=5 // pred_check
        _
      $region10: #{tpu_custom_call.1} parent=5 // pred_check_branch
        %155 = sbr.rel (%p152) target = $region12
      $region11: #{tpu_custom_call.1} parent=5 // pred_region
        %s156 = ssub.s32 %s22, 1
      $region12: #{tpu_custom_call.1} parent=5 // pred_fallthru
        _
      %p157 = scmp.lt.s32.totalorder %s22, 2
      // Predicated region
      $region13: #{tpu_custom_call.1} parent=5 // pred_check
        %p158 = pneg %p157
      $region14: #{tpu_custom_call.1} parent=5 // pred_check_branch
        %160 = sbr.rel (%p158) target = $region16
      $region15: #{tpu_custom_call.1} parent=5 // pred_region
        // Predicated region
        $region17: #{tpu_custom_call.1} parent=15 // pred_check
          %p161 = pneg %p56
        $region18: #{tpu_custom_call.1} parent=15 // pred_check_branch
          %163 = sbr.rel (%p161) target = $region20
        $region19: #{tpu_custom_call.1} parent=15 // pred_region
          %s164 = sand.u32 %s46, 1
          %s165 = scalar_lea.sflag [#allocation3], %s164
          %s166 = sand.u32 %s46, 1
          %s167 = smul.addr %s166, 32
          %s168 = scalar_lea.vmem [#allocation2], %s167
          %s169 = sadd.s32 %s29, %s30
          %s170 = smul.u32 4, %s169
          %172 = vsyncadd %s165, 0
          %s173 = smul.addr %s170, 8
          %s174 = scalar_lea.hbm %s0, %s173
          %s175 = sshll.u32 %s174, 4
          %s176 = int_to_ptr.hbm [resolvable:$true] %s175
          %s177 = sshll.u32 %s168, 4
          %s178 = int_to_ptr.vmem [resolvable:$true] %s177
          %183 = dma.hbm_to_vmem [thread:$0]  %s176, 512, %s178, %s165, 128, 128, 8
        $region20: #{tpu_custom_call.1} parent=15 // pred_fallthru
          _
        // Predicated region
        $region21: #{tpu_custom_call.1} parent=15 // pred_check
          %p184 = pneg %p84
        $region22: #{tpu_custom_call.1} parent=15 // pred_check_branch
          %186 = sbr.rel (%p184) target = $region24
        $region23: #{tpu_custom_call.1} parent=15 // pred_region
          %s187 = sand.u32 %s74, 1
          %s188 = scalar_lea.sflag [#allocation6], %s187
          %s189 = sand.u32 %s74, 1
          %s190 = smul.addr %s189, 8
          %s191 = scalar_lea.vmem [#allocation5], %s190
          %s192 = sadd.s32 %s29, %s30
          %194 = vsyncadd %s188, 0
          %s195 = smul.addr %s192, 8
          %s196 = scalar_lea.hbm %s1, %s195
          %s198 = sshll.u32 %s196, 4
          %s199 = int_to_ptr.hbm [resolvable:$true] %s198
          %s200 = sshll.u32 %s191, 4
          %s201 = int_to_ptr.vmem [resolvable:$true] %s200
          %203 = dma.hbm_to_vmem [thread:$0]  %s199, 128, %s201, %s188
        $region24: #{tpu_custom_call.1} parent=15 // pred_fallthru
          _
      $region16: #{tpu_custom_call.1} parent=5 // pred_fallthru
        _
      %p204 = scmp.le.s32.totalorder 1, %s22
      %p205 = scmp.lt.s32.totalorder %s22, 3
      %p206 = pnand %p204, %p205
      %p207 = pneg %p206
      // Predicated region
      $region25: #{tpu_custom_call.1} parent=5 // pred_check
        _
      $region26: #{tpu_custom_call.1} parent=5 // pred_check_branch
        %209 = sbr.rel (%p206) target = $region28
      $region27: #{tpu_custom_call.1} parent=5 // pred_region
        %s210 = ssub.s32 %s22, 1
        %s211 = sand.u32 %s49, 1
        %s212 = scalar_lea.sflag [#allocation3], %s211
        %s213 = sand.u32 %s49, 1
        %s214 = smul.addr %s213, 32
        %s215 = scalar_lea.vmem [#allocation2], %s214
        // Predicated region
        $region29: #{tpu_custom_call.1} parent=27 // pred_check
          %p216 = pneg %p62
        $region30: #{tpu_custom_call.1} parent=27 // pred_check_branch
          %218 = sbr.rel (%p216) target = $region32
        $region31: #{tpu_custom_call.1} parent=27 // pred_region
          %220 = dma.done %s212, 512
        $region32: #{tpu_custom_call.1} parent=27 // pred_fallthru
          _
        %s221 = sand.u32 %s77, 1
        %s222 = scalar_lea.sflag [#allocation6], %s221
        %s223 = sand.u32 %s77, 1
        %s224 = smul.addr %s223, 8
        %s225 = scalar_lea.vmem [#allocation5], %s224
        // Predicated region
        $region33: #{tpu_custom_call.1} parent=27 // pred_check
          %p226 = pneg %p90
        $region34: #{tpu_custom_call.1} parent=27 // pred_check_branch
          %228 = sbr.rel (%p226) target = $region36
        $region35: #{tpu_custom_call.1} parent=27 // pred_region
          %230 = dma.done %s222, 128
        $region36: #{tpu_custom_call.1} parent=27 // pred_fallthru
          _
        %s231 = sand.u32 %s49, 1
        %s232 = scalar_lea.sflag [#allocation3], %s231
        %s233 = sand.u32 %s49, 1
        %s234 = smul.addr %s233, 32
        %s235 = scalar_lea.vmem [#allocation2], %s234
        %p236 = pneg %p62
        %p237 = pneg %p59
        %s238 = sand.u32 %s77, 1
        %s239 = scalar_lea.sflag [#allocation6], %s238
        %s240 = sand.u32 %s77, 1
        %s241 = smul.addr %s240, 8
        %s242 = scalar_lea.vmem [#allocation5], %s241
        %p243 = pneg %p90
        %p244 = pneg %p87
        %p245 = pneg %p116
        %p246 = pneg %p113
        %s247 = sand.u32 %s103, 1
        %s248 = scalar_lea.sflag [#allocation4], %s247
        %s249 = sand.u32 %s103, 1
        %s250 = smul.addr %s249, 8
        %s251 = scalar_lea.vmem [#allocation7], %s250
        %p252 = pneg %p142
        %p253 = pneg %p139
        %s254 = sand.u32 %s129, 1
        %s255 = scalar_lea.sflag [#allocation9], %s254
        %s256 = sand.u32 %s129, 1
        %s257 = smul.addr %s256, 8
        %s258 = scalar_lea.vmem [#allocation8], %s257
        %s259 = sadd.s32 %s31, %s32
        %s260 = smul.u32 4, %s259
        %s261 = sadd.s32 %s31, %s32
        %p262 = scmp.eq.s32.totalorder %s32, 0
        // Predicated region
        $region37: #{tpu_custom_call.1} parent=27 // pred_check
          %p263 = pneg %p262
        $region38: #{tpu_custom_call.1} parent=27 // pred_check_branch
          %265 = sbr.rel (%p263) target = $region40
        $region39: #{tpu_custom_call.1} parent=27 // pred_region
          %266 = vst [vmem:[%s251] sm:$0xff] 0.0
          %267 = vst [vmem:[%s258] sm:$0xff] 0.0
        $region40: #{tpu_custom_call.1} parent=27 // pred_fallthru
          _
        %v268 = vld [vmem:[%s215] sm:$0xff]
        %v269 = vld [vmem:[%s215 + $0x8] sm:$0xff]
        %v270 = vld [vmem:[%s215 + $0x10] sm:$0xff]
        %v271 = vld [vmem:[%s215 + $0x18] sm:$0xff]
        %v272 = vld [vmem:[%s225] sm:$0xff]
        %v273 = vunpack.c.0.s8 %v272
        %v274 = vunpack.c.1.s8 %v272
        %v275 = vunpack.c.2.s8 %v272
        %v276 = vunpack.c.3.s8 %v272
        %vm277 = vcmp.eq.s32.totalorder %v273, 1
        %vm278 = vcmp.eq.s32.totalorder %v274, 1
        %vm279 = vcmp.eq.s32.totalorder %v275, 1
        %vm280 = vcmp.eq.s32.totalorder %v276, 1
        %v281 = vsub.f32 0.0, %v268
        %v282 = vsub.f32 0.0, %v269
        %v283 = vsub.f32 0.0, %v270
        %v284 = vsub.f32 0.0, %v271
        %v285 = vsel %vm277, %v268, %v281
        %v286 = vsel %vm278, %v269, %v282
        %v287 = vsel %vm279, %v270, %v283
        %v288 = vsel %vm280, %v271, %v284
        %v289 = vand.u32 2147483647, %v285
        %v290 = vand.u32 2147483647, %v286
        %v291 = vand.u32 2147483647, %v287
        %v292 = vand.u32 2147483647, %v288
        %v293 = vsub.f32 0.0, %v289
        %v294 = vsub.f32 0.0, %v290
        %v295 = vsub.f32 0.0, %v291
        %v296 = vsub.f32 0.0, %v292
        %v297 = vmul.f32 %v293, 1.442695
        %v298 = vpow.pop %v297
        %v299 = vmul.f32 %v294, 1.442695
        %v300 = vpow.pop %v299
        %v301 = vmul.f32 %v295, 1.442695
        %v302 = vpow.pop %v301
        %v303 = vmul.f32 %v296, 1.442695
        %v304 = vpow.pop %v303
        %v305 = vsub.f32 0.0, %v285
        %v306 = vsub.f32 0.0, %v286
        %v307 = vsub.f32 0.0, %v287
        %v308 = vsub.f32 0.0, %v288
        %v309 = vmax.f32 %v305, 0.0
        %v310 = vmax.f32 %v306, 0.0
        %v311 = vmax.f32 %v307, 0.0
        %v312 = vmax.f32 %v308, 0.0
        %v313 = vadd.f32 %v298, 1.0
        %v314 = vlog2.pop %v313
        %v315 = vmul.f32 %v314, 0.6931472
        %v316 = vmul.f32 -0.5, %v298
        %v317 = vadd.f32 %v316, 1.0
        %v318 = vmul.f32 %v317, %v298
        %v319 = vand.u32 2147483647, %v298
        %vm320 = vcmp.lt.f32.partialorder %v319, 0.0004427343
        %v321 = vsel %vm320, %v318, %v315
        %v322 = vadd.f32 %v300, 1.0
        %v323 = vlog2.pop %v322
        %v324 = vmul.f32 %v323, 0.6931472
        %v325 = vmul.f32 -0.5, %v300
        %v326 = vadd.f32 %v325, 1.0
        %v327 = vmul.f32 %v326, %v300
        %v328 = vand.u32 2147483647, %v300
        %vm329 = vcmp.lt.f32.partialorder %v328, 0.0004427343
        %v330 = vsel %vm329, %v327, %v324
        %v331 = vadd.f32 %v302, 1.0
        %v332 = vlog2.pop %v331
        %v333 = vmul.f32 %v332, 0.6931472
        %v334 = vmul.f32 -0.5, %v302
        %v335 = vadd.f32 %v334, 1.0
        %v336 = vmul.f32 %v335, %v302
        %v337 = vand.u32 2147483647, %v302
        %vm338 = vcmp.lt.f32.partialorder %v337, 0.0004427343
        %v339 = vsel %vm338, %v336, %v333
        %v340 = vadd.f32 %v304, 1.0
        %v341 = vlog2.pop %v340
        %v342 = vmul.f32 %v341, 0.6931472
        %v343 = vmul.f32 -0.5, %v304
        %v344 = vadd.f32 %v343, 1.0
        %v345 = vmul.f32 %v344, %v304
        %v346 = vand.u32 2147483647, %v304
        %vm347 = vcmp.lt.f32.partialorder %v346, 0.0004427343
        %v348 = vsel %vm347, %v345, %v342
        %v349 = vadd.f32 %v309, %v321
        %v350 = vadd.f32 %v310, %v330
        %v351 = vadd.f32 %v311, %v339
        %v352 = vadd.f32 %v312, %v348
        %v353 = vsub.f32 0.0, %v349
        %v354 = vsub.f32 0.0, %v350
        %v355 = vsub.f32 0.0, %v351
        %v356 = vsub.f32 0.0, %v352
        %v357 = vadd.f32 %v298, 1.0
        %v358 = vadd.f32 %v300, 1.0
        %v359 = vadd.f32 %v302, 1.0
        %v360 = vadd.f32 %v304, 1.0
        %v361 = vrcp.pop %v357
        %v362 = vmul.f32 %v357, %v361
        %v363 = vsub.f32 1.0, %v362
        %v364 = vmul.f32 %v361, %v363
        %v365 = vadd.f32 %v361, %v364
        %vm366 = vweird.f32 %v357
        %vm367 = vweird.f32 %v361
        %vm368 = vmor %vm366, %vm367
        %v369 = vsel %vm368, %v361, %v365
        %v370 = vand.u32 2147483647, %v357
        %vm371 = vcmp.eq.f32.partialorder %v370, 8.507059e+37
        %v372 = vand.u32 %v357, 2147483648
        %v373 = vor.u32 1.1754944e-38, %v372
        %v374 = vsel %vm371, %v373, %v369
        %v375 = vmul.f32 1.0, %v374
        %v376 = vrcp.pop %v358
        %v377 = vmul.f32 %v358, %v376
        %v378 = vsub.f32 1.0, %v377
        %v379 = vmul.f32 %v376, %v378
        %v380 = vadd.f32 %v376, %v379
        %vm381 = vweird.f32 %v358
        %vm382 = vweird.f32 %v376
        %vm383 = vmor %vm381, %vm382
        %v384 = vsel %vm383, %v376, %v380
        %v385 = vand.u32 2147483647, %v358
        %vm386 = vcmp.eq.f32.partialorder %v385, 8.507059e+37
        %v387 = vand.u32 %v358, 2147483648
        %v388 = vor.u32 1.1754944e-38, %v387
        %v389 = vsel %vm386, %v388, %v384
        %v390 = vmul.f32 1.0, %v389
        %v391 = vrcp.pop %v359
        %v392 = vmul.f32 %v359, %v391
        %v393 = vsub.f32 1.0, %v392
        %v394 = vmul.f32 %v391, %v393
        %v395 = vadd.f32 %v391, %v394
        %vm396 = vweird.f32 %v359
        %vm397 = vweird.f32 %v391
        %vm398 = vmor %vm396, %vm397
        %v399 = vsel %vm398, %v391, %v395
        %v400 = vand.u32 2147483647, %v359
        %vm401 = vcmp.eq.f32.partialorder %v400, 8.507059e+37
        %v402 = vand.u32 %v359, 2147483648
        %v403 = vor.u32 1.1754944e-38, %v402
        %v404 = vsel %vm401, %v403, %v399
        %v405 = vmul.f32 1.0, %v404
        %v406 = vrcp.pop %v360
        %v407 = vmul.f32 %v360, %v406
        %v408 = vsub.f32 1.0, %v407
        %v409 = vmul.f32 %v406, %v408
        %v410 = vadd.f32 %v406, %v409
        %vm411 = vweird.f32 %v360
        %vm412 = vweird.f32 %v406
        %vm413 = vmor %vm411, %vm412
        %v414 = vsel %vm413, %v406, %v410
        %v415 = vand.u32 2147483647, %v360
        %vm416 = vcmp.eq.f32.partialorder %v415, 8.507059e+37
        %v417 = vand.u32 %v360, 2147483648
        %v418 = vor.u32 1.1754944e-38, %v417
        %v419 = vsel %vm416, %v418, %v414
        %v420 = vmul.f32 1.0, %v419
        %vm421 = vcmp.ge.f32.partialorder %v285, 0.0
        %vm422 = vcmp.ge.f32.partialorder %v286, 0.0
        %vm423 = vcmp.ge.f32.partialorder %v287, 0.0
        %vm424 = vcmp.ge.f32.partialorder %v288, 0.0
        %v425 = vmul.f32 %v298, %v375
        %v426 = vmul.f32 %v300, %v390
        %v427 = vmul.f32 %v302, %v405
        %v428 = vmul.f32 %v304, %v420
        %v429 = vsel %vm421, %v375, %v425
        %v430 = vsel %vm422, %v390, %v426
        %v431 = vsel %vm423, %v405, %v427
        %v432 = vsel %vm424, %v420, %v428
        %v433 = vsel %vm277, 0.75, 0.25
        %v434 = vsel %vm278, 0.75, 0.25
        %v435 = vsel %vm279, 0.75, 0.25
        %v436 = vsel %vm280, 0.75, 0.25
        %vm437 = vcmp.ge.s32.totalorder %v273, 0
        %vm438 = vcmp.ge.s32.totalorder %v274, 0
        %vm439 = vcmp.ge.s32.totalorder %v275, 0
        %vm440 = vcmp.ge.s32.totalorder %v276, 0
        %v441 = vsel %vm437, %v433, 0.0
        %v442 = vsel %vm438, %v434, 0.0
        %v443 = vsel %vm439, %v435, 0.0
        %v444 = vsel %vm440, %v436, 0.0
        %v445 = vsub.f32 0.0, %v441
        %v446 = vsub.f32 0.0, %v442
        %v447 = vsub.f32 0.0, %v443
        %v448 = vsub.f32 0.0, %v444
        %v449 = vmul.f32 %v445, %v353
        %v450 = vmul.f32 %v446, %v354
        %v451 = vmul.f32 %v447, %v355
        %v452 = vmul.f32 %v448, %v356
        %v453 = vsub.f32 1.0, %v429
        %v454 = vsub.f32 1.0, %v430
        %v455 = vsub.f32 1.0, %v431
        %v456 = vsub.f32 1.0, %v432
        %v457 = vmul.f32 %v453, %v453
        %v458 = vmul.f32 %v454, %v454
        %v459 = vmul.f32 %v455, %v455
        %v460 = vmul.f32 %v456, %v456
        %v461 = vmul.f32 %v457, %v449
        %v462 = vmul.f32 %v458, %v450
        %v463 = vmul.f32 %v459, %v451
        %v464 = vmul.f32 %v460, %v452
        %v465 = vld [vmem:[%s251] sm:$0x1]
        %v466 = vadd.f32 %v461, %v462
        %v467 = vadd.f32 %v466, %v463
        %v468 = vadd.f32 %v467, %v464
        %v469 = vrot.slane %v468, 4
        %v470 = vadd.f32 %v468, %v469
        %v471 = vrot.slane %v470, 2
        %v472 = vadd.f32 %v470, %v471
        %v473 = vrot.slane %v472, 1
        %v474 = vadd.f32 %v472, %v473
        %v475 = vadd.f32 %v465, %v474
        %476 = vst [vmem:[%s251] sm:$0x1] %v475
        %v477 = vld [vmem:[%s258] sm:$0x1]
        %v478 = vadd.f32 %v441, %v442
        %v479 = vadd.f32 %v478, %v443
        %v480 = vadd.f32 %v479, %v444
        %v481 = vrot.slane %v480, 4
        %v482 = vadd.f32 %v480, %v481
        %v483 = vrot.slane %v482, 2
        %v484 = vadd.f32 %v482, %v483
        %v485 = vrot.slane %v484, 1
        %v486 = vadd.f32 %v484, %v485
        %v487 = vadd.f32 %v477, %v486
        %488 = vst [vmem:[%s258] sm:$0x1] %v487
        %s489 = sand.u32 %s103, 1
        %s490 = scalar_lea.sflag [#allocation4], %s489
        %s491 = sand.u32 %s103, 1
        %s492 = smul.addr %s491, 8
        %s493 = scalar_lea.vmem [#allocation7], %s492
        %s494 = sand.u32 %s129, 1
        %s495 = scalar_lea.sflag [#allocation9], %s494
        %s496 = sand.u32 %s129, 1
        %s497 = smul.addr %s496, 8
        %s498 = scalar_lea.vmem [#allocation8], %s497
        // Predicated region
        $region41: #{tpu_custom_call.1} parent=27 // pred_check
          %p499 = pneg %p113
        $region42: #{tpu_custom_call.1} parent=27 // pred_check_branch
          %501 = sbr.rel (%p499) target = $region44
        $region43: #{tpu_custom_call.1} parent=27 // pred_region
          %503 = vsyncadd %s490, 0
          %s504 = smul.addr %s31, 8
          %s505 = scalar_lea.hbm %s2, %s504
          %s507 = sshll.u32 %s493, 4
          %s508 = int_to_ptr.vmem [resolvable:$true] %s507
          %s509 = sshll.u32 %s505, 4
          %s510 = int_to_ptr.hbm [resolvable:$true] %s509
          %512 = dma.vmem_to_hbm [thread:$0]  %s508, 128, %s510, %s490
        $region44: #{tpu_custom_call.1} parent=27 // pred_fallthru
          _
        // Predicated region
        $region45: #{tpu_custom_call.1} parent=27 // pred_check
          %p513 = pneg %p139
        $region46: #{tpu_custom_call.1} parent=27 // pred_check_branch
          %515 = sbr.rel (%p513) target = $region48
        $region47: #{tpu_custom_call.1} parent=27 // pred_region
          %517 = vsyncadd %s495, 0
          %s518 = smul.addr %s31, 8
          %s519 = scalar_lea.hbm %s3, %s518
          %s521 = sshll.u32 %s498, 4
          %s522 = int_to_ptr.vmem [resolvable:$true] %s521
          %s523 = sshll.u32 %s519, 4
          %s524 = int_to_ptr.hbm [resolvable:$true] %s523
          %526 = dma.vmem_to_hbm [thread:$0]  %s522, 128, %s524, %s495
        $region48: #{tpu_custom_call.1} parent=27 // pred_fallthru
          _
      $region28: #{tpu_custom_call.1} parent=5 // pred_fallthru
        _
      %p527 = scmp.le.s32.totalorder 2, %s22
      // Predicated region
      $region49: #{tpu_custom_call.1} parent=5 // pred_check
        %p528 = pneg %p527
      $region50: #{tpu_custom_call.1} parent=5 // pred_check_branch
        %530 = sbr.rel (%p528) target = $region52
      $region51: #{tpu_custom_call.1} parent=5 // pred_region
        %s531 = ssub.s32 %s22, 2
        // Predicated region
        $region53: #{tpu_custom_call.1} parent=51 // pred_check
          %p532 = pneg %p119
        $region54: #{tpu_custom_call.1} parent=51 // pred_check_branch
          %534 = sbr.rel (%p532) target = $region56
        $region55: #{tpu_custom_call.1} parent=51 // pred_region
          %s535 = sand.u32 %s104, 1
          %s536 = scalar_lea.sflag [#allocation4], %s535
          %s537 = sand.u32 %s104, 1
          %s538 = smul.addr %s537, 8
          %s539 = scalar_lea.vmem [#allocation7], %s538
          %541 = dma.done %s536, 128
        $region56: #{tpu_custom_call.1} parent=51 // pred_fallthru
          _
        // Predicated region
        $region57: #{tpu_custom_call.1} parent=51 // pred_check
          %p542 = pneg %p145
        $region58: #{tpu_custom_call.1} parent=51 // pred_check_branch
          %544 = sbr.rel (%p542) target = $region60
        $region59: #{tpu_custom_call.1} parent=51 // pred_region
          %s545 = sand.u32 %s130, 1
          %s546 = scalar_lea.sflag [#allocation9], %s545
          %s547 = sand.u32 %s130, 1
          %s548 = smul.addr %s547, 8
          %s549 = scalar_lea.vmem [#allocation8], %s548
          %551 = dma.done %s546, 128
        $region60: #{tpu_custom_call.1} parent=51 // pred_fallthru
          _
      $region52: #{tpu_custom_call.1} parent=5 // pred_fallthru
        _
    $region6: #{tpu_custom_call.1} parent=1 // loop_footer
      %s26 = sadd.s32 1, %s22
    $region7: #{tpu_custom_call.1} parent=1 // loop_footer_branch
      %21 = sbr.rel target = $region3
    $region8: #{tpu_custom_call.1} parent=1 // loop_exit
      _
    %552 = vsyncpa [#allocation3], 1
    %s553 = scalar_lea.sflag [#allocation3], 1
    %554 = vsyncpa %s553, 1
    %555 = vsyncpa [#allocation6], 1
    %s556 = scalar_lea.sflag [#allocation6], 1
    %557 = vsyncpa %s556, 1
    %558 = vsyncpa [#allocation4], 1
    %s559 = scalar_lea.sflag [#allocation4], 1
    %560 = vsyncpa %s559, 1
    %561 = vsyncpa [#allocation9], 1
    %s562 = scalar_lea.sflag [#allocation9], 1
    %563 = vsyncpa %s562, 1

</llo_original>
